<compile_context>
chip_gen: v6e
topology: v6e:2x2x1
jax: 0.10.0
libtpu: 0.0.40
codegen_flags: <defaults>
</compile_context>

<pallas_src>
import functools

import jax
import jax.numpy as jnp
from jax import lax
from jax.experimental import pallas as pl
from jax.experimental.pallas import tpu as pltpu

_LANE = 128
_SUBLANE = 8
_TM_MAX = 4096          # rows per block: 4096 * 128 * 4B = 2 MiB per f32 input block
_NUM_CORES = 2          # v7x has 2 TensorCores; extra sequential pass is harmless on v5e/v6e


def _round_up(a, b):
    return (a + b - 1) // b * b


def _make_kernel(rows, tm, n_inner, nblocks, needs_mask):
    n_sub = tm // _SUBLANE

    def kernel(x_ref, t_ref, o_ref, acc_ref):
        i = pl.program_id(1)

        @pl.when(i == 0)
        def _init():
            acc_ref[...] = jnp.zeros_like(acc_ref)

        x = x_ref[...].astype(jnp.float32)
        t = t_ref[...].astype(jnp.float32)
        # sigmoid(t) - sigmoid(x) == 0.5 * (tanh(t/2) - tanh(x/2)):
        # 2 EUP pushes per element instead of 4; the 0.5*0.5 scale is applied
        # once in the wrapper.
        # TODO(synk): on v7x, if the EUP slot ever binds at 3.2 TB/s HBM, move
        # the tanh path to bf16 (packs 2 elems/lane); keep f32 on v5e.
        loss = (jnp.tanh(t * 0.5) - jnp.tanh(x * 0.5)) * (t - x)

        def _accumulate(val):
            # Free view along the sublane tiling -> pure VPU vreg adds into a
            # single (8, 128) accumulator vreg.
            acc_ref[...] += val.reshape(n_sub, _SUBLANE, _LANE).sum(axis=0)

        if needs_mask:
            blk = pl.program_id(0) * n_inner + i

            @pl.when(blk < nblocks - 1)
            def _fast():
                _accumulate(loss)

            @pl.when(blk >= nblocks - 1)
            def _masked():
                # Rows past the true extent (partial last block, or grid steps
                # whose DMA index was clamped in-bounds) contribute exactly 0.
                # Keep this a select (not a multiply) so NaN/Inf garbage in the
                # unselected branch cannot leak.
                row_ids = blk * tm + lax.broadcasted_iota(jnp.int32, (tm, _LANE), 0)
                _accumulate(jnp.where(row_ids < rows, loss, jnp.float32(0.0)))
        else:
            _accumulate(loss)

        @pl.when(i == pl.num_programs(1) - 1)
        def _finalize():
            # Lane-dense partial: single unmasked vreg store, no XLU reduce.
            o_ref[0] = acc_ref[...]

    return kernel


@functools.partial(jax.jit, static_argnames=("reduction",))
def multilabel_cross_entropy_kld(inp, target, reduction="sum"):
    """Pallas implementation of MultiLabelCrossEntropyKLD.forward."""
    assert inp.shape == target.shape
    n_elems = inp.size

    if n_elems == 0:
        total = jnp.float32(0.0)
        return total / jnp.float32(n_elems) if reduction == "mean" else total

    x1 = inp.reshape(-1)        # free reshape; original dtype kept (cast in kernel)
    t1 = target.reshape(-1)

    n_main = (n_elems // _LANE) * _LANE
    tail = n_elems - n_main

    total = jnp.float32(0.0)

    if n_main > 0:
        # TODO(synk): for non-128-aligned sizes the prefix slice may materialize
        # a copy; still cheaper than padding both full arrays through HBM.
        x2 = (x1[:n_main] if tail else x1).reshape(n_main // _LANE, _LANE)
        t2 = (t1[:n_main] if tail else t1).reshape(n_main // _LANE, _LANE)
        rows = n_main // _LANE

        tm = min(_TM_MAX, _round_up(rows, _SUBLANE))
        nblocks = pl.cdiv(rows, tm)
        n_inner = pl.cdiv(nblocks, _NUM_CORES)
        needs_mask = (_NUM_CORES * n_inner * tm) != rows

        if needs_mask:
            def in_map(c, i):
                # Clamp so every block DMA lands in-bounds; logically-OOB rows
                # are masked to zero inside the kernel.
                return (jnp.minimum(c * n_inner + i, nblocks - 1), 0)
        else:
            def in_map(c, i):
                return (c * n_inner + i, 0)

        bytes_per_elem = x1.dtype.itemsize + t1.dtype.itemsize
        cost = pl.CostEstimate(
            flops=5 * n_main,
            transcendentals=2 * n_main,
            bytes_accessed=bytes_per_elem * n_main + _NUM_CORES * _SUBLANE * _LANE * 4,
        )

        partials = pl.pallas_call(
            _make_kernel(rows, tm, n_inner, nblocks, needs_mask),
            out_shape=jax.ShapeDtypeStruct((_NUM_CORES, _SUBLANE, _LANE), jnp.float32),
            grid=(_NUM_CORES, n_inner),
            in_specs=[
                # TODO(synk): on v7x, sweep pipeline_mode=pl.Buffered(3) here.
                pl.BlockSpec((tm, _LANE), in_map),
                pl.BlockSpec((tm, _LANE), in_map),
            ],
            out_specs=pl.BlockSpec((1, _SUBLANE, _LANE), lambda c, i: (c, 0, 0)),
            scratch_shapes=[pltpu.VMEM((_SUBLANE, _LANE), jnp.float32)],
            compiler_params=pltpu.CompilerParams(
                # TODO(synk): on v7x, verify via xprof that axis 0 shards across
                # both TensorCores; if not, switch to pltpu.CORE_PARALLEL.
                dimension_semantics=("parallel", "arbitrary"),
            ),
            cost_estimate=cost,
        )(x2, t2)

        # 0.25 = 0.5 (loss scale) * 0.5 (tanh identity), applied once here.
        total = total + jnp.sum(partials) * jnp.float32(0.25)

    if tail:
        xt = x1[n_main:].astype(jnp.float32)
        tt = t1[n_main:].astype(jnp.float32)
        total = total + jnp.sum(
            (jax.nn.sigmoid(tt) - jax.nn.sigmoid(xt)) * (tt - xt)
        ) * jnp.float32(0.5)

    if reduction == "mean":
        total = total / jnp.float32(n_elems)
    return total


def _reference(inp, target, reduction="sum"):
    x = inp.astype(jnp.float32)
    t = target.astype(jnp.float32)
    loss = (jax.nn.sigmoid(t) - jax.nn.sigmoid(x)) * (t - x) * 0.5
    return loss.mean() if reduction == "mean" else loss.sum()


if __name__ == "__main__":
    key = jax.random.PRNGKey(0)
    k1, k2, k3, k4 = jax.random.split(key, 4)

    # NCHW-style logits / target logits (the module has no parameters).
    x = jax.random.normal(k1, (2, 4, 16, 16), dtype=jnp.float32)
    y = jax.random.normal(k2, (2, 4, 16, 16), dtype=jnp.float32)

    loss_sum = multilabel_cross_entropy_kld(x, y, reduction="sum")
    loss_mean = multilabel_cross_entropy_kld(x, y, reduction="mean")
    jax.block_until_ready((loss_sum, loss_mean))

    ref_sum = _reference(x, y, "sum")
    ref_mean = _reference(x, y, "mean")
    assert jnp.allclose(loss_sum, ref_sum, rtol=1e-5, atol=1e-4), (loss_sum, ref_sum)
    assert jnp.allclose(loss_mean, ref_mean, rtol=1e-5, atol=1e-5), (loss_mean, ref_mean)

    # Small non-128-aligned case exercises the jnp tail path (no kernel launch).
    xr = jax.random.normal(k3, (3, 5, 7), dtype=jnp.float32)
    yr = jax.random.normal(k4, (3, 5, 7), dtype=jnp.float32)
    loss_r = multilabel_cross_entropy_kld(xr, yr, reduction="sum")
    jax.block_until_ready(loss_r)
    assert jnp.allclose(loss_r, _reference(xr, yr, "sum"), rtol=1e-5, atol=1e-4)

    print("KERNEL_OK")
</pallas_src>

<mosaic_0001>
module attributes {stable_mosaic.version = 11 : i64} {
  func.func @kernel(%arg0: i32, %arg1: i32, %arg2: memref<16x128xf32, #tpu.memory_space<vmem>>, %arg3: memref<16x128xf32, #tpu.memory_space<vmem>>, %arg4: memref<1x8x128xf32, #tpu.memory_space<vmem>>, %arg5: memref<8x128xf32, #tpu.memory_space<vmem>>) attributes {dimension_semantics = [#tpu.dimension_semantics<parallel>, #tpu.dimension_semantics<arbitrary>], iteration_bounds = array<i64: 2, 1>, scalar_prefetch = 0 : i64, scratch_operands = 1 : i64, tpu.core_type = #tpu.core_type<tc>, window_params = [{transform_indices = @transform_0, window_bounds = array<i64: 16, 128>}, {transform_indices = @transform_1, window_bounds = array<i64: 16, 128>}, {transform_indices = @transform_2, window_bounds = array<i64: 1, 8, 128>}]} {
    %c0_i32 = arith.constant 0 : i32
    %0 = arith.cmpi eq, %arg1, %c0_i32 : i32
    %1 = arith.extui %0 : i1 to i32
    %c0_i32_0 = arith.constant 0 : i32
    %2 = arith.cmpi ne, %1, %c0_i32_0 : i32
    scf.if %2 {
      %cst_11 = arith.constant 0.000000e+00 : f32
      %25 = vector.broadcast %cst_11 : f32 to vector<8x128xf32>
      %c0_12 = arith.constant 0 : index
      %c0_13 = arith.constant 0 : index
      %26 = vector.load %arg5[%c0_12, %c0_13] : memref<8x128xf32, #tpu.memory_space<vmem>>, vector<8x128xf32>
      tpu.vector_store %arg5[%c0_12, %c0_13], %25 {strides = array<i32>} : memref<8x128xf32, #tpu.memory_space<vmem>>, vector<8x128xf32>,
    } else {
    }
    %c0 = arith.constant 0 : index
    %c0_1 = arith.constant 0 : index
    %3 = vector.load %arg2[%c0, %c0_1] : memref<16x128xf32, #tpu.memory_space<vmem>>, vector<16x128xf32>
    %c0_2 = arith.constant 0 : index
    %c0_3 = arith.constant 0 : index
    %4 = vector.load %arg3[%c0_2, %c0_3] : memref<16x128xf32, #tpu.memory_space<vmem>>, vector<16x128xf32>
    %cst = arith.constant 5.000000e-01 : f32
    %5 = vector.broadcast %cst : f32 to vector<16x128xf32>
    %6 = arith.mulf %4, %5 : vector<16x128xf32>
    %7 = math.tanh %6 : vector<16x128xf32>
    %cst_4 = arith.constant 5.000000e-01 : f32
    %8 = vector.broadcast %cst_4 : f32 to vector<16x128xf32>
    %9 = arith.mulf %3, %8 : vector<16x128xf32>
    %10 = math.tanh %9 : vector<16x128xf32>
    %11 = arith.subf %7, %10 : vector<16x128xf32>
    %12 = arith.subf %4, %3 : vector<16x128xf32>
    %13 = arith.mulf %11, %12 : vector<16x128xf32>
    %c1_i32 = arith.constant 1 : i32
    %14 = arith.muli %arg0, %c1_i32 : i32
    %15 = arith.addi %14, %arg1 : i32
    %c0_i32_5 = arith.constant 0 : i32
    %16 = arith.cmpi slt, %15, %c0_i32_5 : i32
    %17 = arith.extui %16 : i1 to i32
    %c0_i32_6 = arith.constant 0 : i32
    %18 = arith.cmpi ne, %17, %c0_i32_6 : i32
    scf.if %18 {
      %c0_11 = arith.constant 0 : index
      %c0_12 = arith.constant 0 : index
      %25 = vector.load %arg5[%c0_11, %c0_12] : memref<8x128xf32, #tpu.memory_space<vmem>>, vector<8x128xf32>
      %26 = vector.shape_cast %13 : vector<16x128xf32> to vector<2x8x128xf32>
      %cst_13 = arith.constant dense<0.000000e+00> : vector<8x128xf32>
      %27 = vector.multi_reduction <add>, %26, %cst_13 [0] : vector<2x8x128xf32> to vector<8x128xf32>
      %28 = arith.addf %25, %27 : vector<8x128xf32>
      %c0_14 = arith.constant 0 : index
      %c0_15 = arith.constant 0 : index
      %29 = vector.load %arg5[%c0_14, %c0_15] : memref<8x128xf32, #tpu.memory_space<vmem>>, vector<8x128xf32>
      tpu.vector_store %arg5[%c0_14, %c0_15], %28 {strides = array<i32>} : memref<8x128xf32, #tpu.memory_space<vmem>>, vector<8x128xf32>,
    } else {
    }
    %c0_i32_7 = arith.constant 0 : i32
    %19 = arith.cmpi sge, %15, %c0_i32_7 : i32
    %20 = arith.extui %19 : i1 to i32
    %c0_i32_8 = arith.constant 0 : i32
    %21 = arith.cmpi ne, %20, %c0_i32_8 : i32
    scf.if %21 {
      %c16_i32 = arith.constant 16 : i32
      %25 = arith.muli %15, %c16_i32 : i32
      %26 = tpu.iota {dimensions = array<i32: 0>} : vector<16x128xi32>
      %27 = vector.broadcast %25 : i32 to vector<16x128xi32>
      %28 = arith.addi %27, %26 : vector<16x128xi32>
      %c16_i32_11 = arith.constant 16 : i32
      %29 = vector.broadcast %c16_i32_11 : i32 to vector<16x128xi32>
      %30 = arith.cmpi slt, %28, %29 : vector<16x128xi32>
      %cst_12 = arith.constant 0.000000e+00 : f32
      %31 = vector.broadcast %cst_12 : f32 to vector<16x128xf32>
      %32 = arith.select %30, %13, %31 : vector<16x128xi1>, vector<16x128xf32>
      %c0_13 = arith.constant 0 : index
      %c0_14 = arith.constant 0 : index
      %33 = vector.load %arg5[%c0_13, %c0_14] : memref<8x128xf32, #tpu.memory_space<vmem>>, vector<8x128xf32>
      %34 = vector.shape_cast %32 : vector<16x128xf32> to vector<2x8x128xf32>
      %cst_15 = arith.constant dense<0.000000e+00> : vector<8x128xf32>
      %35 = vector.multi_reduction <add>, %34, %cst_15 [0] : vector<2x8x128xf32> to vector<8x128xf32>
      %36 = arith.addf %33, %35 : vector<8x128xf32>
      %c0_16 = arith.constant 0 : index
      %c0_17 = arith.constant 0 : index
      %37 = vector.load %arg5[%c0_16, %c0_17] : memref<8x128xf32, #tpu.memory_space<vmem>>, vector<8x128xf32>
      tpu.vector_store %arg5[%c0_16, %c0_17], %36 {strides = array<i32>} : memref<8x128xf32, #tpu.memory_space<vmem>>, vector<8x128xf32>,
    } else {
    }
    %c0_i32_9 = arith.constant 0 : i32
    %22 = arith.cmpi eq, %arg1, %c0_i32_9 : i32
    %23 = arith.extui %22 : i1 to i32
    %c0_i32_10 = arith.constant 0 : i32
    %24 = arith.cmpi ne, %23, %c0_i32_10 : i32
    scf.if %24 {
      %c0_11 = arith.constant 0 : index
      %c0_12 = arith.constant 0 : index
      %25 = vector.load %arg5[%c0_11, %c0_12] : memref<8x128xf32, #tpu.memory_space<vmem>>, vector<8x128xf32>
      %c0_13 = arith.constant 0 : index
      %c0_14 = arith.constant 0 : index
      %c0_15 = arith.constant 0 : index
      %26 = vector.load %arg4[%c0_13, %c0_14, %c0_15] : memref<1x8x128xf32, #tpu.memory_space<vmem>>, vector<1x8x128xf32>
      %27 = vector.shape_cast %26 : vector<1x8x128xf32> to vector<8x128xf32>
      %28 = vector.shape_cast %25 : vector<8x128xf32> to vector<1x8x128xf32>
      tpu.vector_store %arg4[%c0_13, %c0_14, %c0_15], %28 {strides = array<i32>} : memref<1x8x128xf32, #tpu.memory_space<vmem>>, vector<1x8x128xf32>,
    } else {
    }
    return
  }
  func.func @transform_0(%arg0: i32, %arg1: i32) -> (i32, i32) {
    %c1_i32 = arith.constant 1 : i32
    %0 = arith.muli %arg0, %c1_i32 : i32
    %1 = arith.addi %0, %arg1 : i32
    %c0_i32 = arith.constant 0 : i32
    %2 = arith.minsi %1, %c0_i32 : i32
    %c0_i32_0 = arith.constant 0 : i32
    %c0_i32_1 = arith.constant 0 : i32
    return %2, %c0_i32_0 : i32, i32
  }
  func.func @transform_1(%arg0: i32, %arg1: i32) -> (i32, i32) {
    %c1_i32 = arith.constant 1 : i32
    %0 = arith.muli %arg0, %c1_i32 : i32
    %1 = arith.addi %0, %arg1 : i32
    %c0_i32 = arith.constant 0 : i32
    %2 = arith.minsi %1, %c0_i32 : i32
    %c0_i32_0 = arith.constant 0 : i32
    %c0_i32_1 = arith.constant 0 : i32
    return %2, %c0_i32_0 : i32, i32
  }
  func.func @transform_2(%arg0: i32, %arg1: i32) -> (i32, i32, i32) {
    %c0_i32 = arith.constant 0 : i32
    %c0_i32_0 = arith.constant 0 : i32
    %c0_i32_1 = arith.constant 0 : i32
    return %arg0, %c0_i32, %c0_i32_0 : i32, i32, i32
  }
}

</mosaic_0001>

<llo_original>
// kernel: multilabel_cross_entropy_kld.1
$region0: #{multilabel_cross_entropy_kld.1}
  #allocation0 [shape = 'u32[]', space=smem, size = 0x4, offset = 0x4, fixed_abs, tag = 'smem constant byte address 0x4 - core index']
  #allocation1 [shape = 'u32[144,128]{1,0:T(1,128)}', space=vmem, size = 0x12000, scoped, tag = 'internal scratch']
  #allocation2 [shape = 'f32[8,128]{1,0:T(8,128)}', space=vmem, size = 0x1000, scoped, tag = 'scratch operand']
  %s0 = inlined_call_operand.vmem [shape: f32[16,128], index: 0, kind: input, shape index: {}]
  %s1 = inlined_call_operand.vmem [shape: f32[16,128], index: 1, kind: input, shape index: {}]
  %s2 = inlined_call_operand.vmem [shape: f32[2,8,128], index: 2, kind: output, shape index: {}]
  %s3 = sld [smem:[#allocation0]]
  $region57: #{multilabel_cross_entropy_kld.1} parent=0
    _
  %s5 = ssub.s32 1, %s3
  %s6 = scalar_select 0, %s5, %s3
  loop: start=0, step=1, limit=4
  $region2: #{multilabel_cross_entropy_kld.1} parent=0 // loop_pre_header
    _
  $region3: #{multilabel_cross_entropy_kld.1} parent=0 // loop_header
    %s8 = sphi 0, %s12
    %p9 = scmp.ge.s32.totalorder %s8, 4
    %s15 = sphi 0, %s27
    %s16 = sphi 0, %s23
    %s17 = sphi 0, %s15
    %s18 = sphi 0, %s16
    %s19 = sphi 0, %s17
    %s20 = sphi 0, %s18
    %s36 = sphi 0, %s38
    %s39 = sphi 0, %s36
    %s40 = sphi 0, %s39
    %s56 = sphi 0, %s40
    %s68 = sphi 0, %s70
    %s71 = sphi 0, %s68
    %s72 = sphi 0, %s71
    %s88 = sphi 0, %s72
    %s94 = sphi 0, %s96
    %s97 = sphi 0, %s94
    %s98 = sphi 0, %s97
    %s114 = sphi 0, %s98
  $region4: #{multilabel_cross_entropy_kld.1} parent=0 // loop_header_branch
    %11 = sbr.rel (%p9) target = $region8
  $region5: #{multilabel_cross_entropy_kld.1} parent=0 // loop_body
    %s13 = ssub.s32 %s8, 1
    %s14 = ssub.s32 %s8, 2
    %s21 = sadd.s32 1, %s16
    %p22 = scmp.ge.s32.totalorder %s21, 1
    %s23 = scalar_select %p22, 0, %s21
    %s24 = sadd.s32 1, %s15
    %s25 = scalar_select %p22, %s24, %s15
    %p26 = scmp.ge.s32.totalorder %s25, 2
    %s27 = scalar_select %p26, 0, %s25
    %s28 = sadd.s32 %s15, %s16
    %p29 = scmp.lt.s32.totalorder %s28, 0
    %s30 = scalar_select %p29, %s28, 0
    %s31 = sadd.s32 %s27, %s23
    %p32 = scmp.lt.s32.totalorder %s31, 0
    %s33 = scalar_select %p32, %s31, 0
    %s34 = ssub.s32 %s30, %s33
    %p35 = scmp.eq.s32.totalorder %s34, 0
    %s37 = sadd.s32 %s36, 1
    %s38 = scalar_select %p35, %s36, %s37
    %p41 = pneg %p35
    %p42 = scmp.eq.s32.totalorder %s8, 1
    %p43 = por %p41, %p42
    %p44 = scmp.ne.s32.totalorder %s36, %s39
    %p45 = scmp.eq.s32.totalorder %s8, 0
    %p46 = por %p44, %p45
    %p47 = scmp.ne.s32.totalorder %s36, %s39
    %p48 = scmp.eq.s32.totalorder %s13, 1
    %p49 = por %p47, %p48
    %p50 = scmp.ne.s32.totalorder %s39, %s40
    %p51 = scmp.eq.s32.totalorder %s13, 0
    %p52 = por %p50, %p51
    %p53 = scmp.ne.s32.totalorder %s39, %s40
    %p54 = scmp.eq.s32.totalorder %s14, 1
    %p55 = por %p53, %p54
    %p57 = scmp.ne.s32.totalorder %s40, %s56
    %p58 = scmp.eq.s32.totalorder %s14, 0
    %p59 = por %p57, %p58
    %s60 = sadd.s32 %s15, %s16
    %p61 = scmp.lt.s32.totalorder %s60, 0
    %s62 = scalar_select %p61, %s60, 0
    %s63 = sadd.s32 %s27, %s23
    %p64 = scmp.lt.s32.totalorder %s63, 0
    %s65 = scalar_select %p64, %s63, 0
    %s66 = ssub.s32 %s62, %s65
    %p67 = scmp.eq.s32.totalorder %s66, 0
    %s69 = sadd.s32 %s68, 1
    %s70 = scalar_select %p67, %s68, %s69
    %p73 = pneg %p67
    %p74 = scmp.eq.s32.totalorder %s8, 1
    %p75 = por %p73, %p74
    %p76 = scmp.ne.s32.totalorder %s68, %s71
    %p77 = scmp.eq.s32.totalorder %s8, 0
    %p78 = por %p76, %p77
    %p79 = scmp.ne.s32.totalorder %s68, %s71
    %p80 = scmp.eq.s32.totalorder %s13, 1
    %p81 = por %p79, %p80
    %p82 = scmp.ne.s32.totalorder %s71, %s72
    %p83 = scmp.eq.s32.totalorder %s13, 0
    %p84 = por %p82, %p83
    %p85 = scmp.ne.s32.totalorder %s71, %s72
    %p86 = scmp.eq.s32.totalorder %s14, 1
    %p87 = por %p85, %p86
    %p89 = scmp.ne.s32.totalorder %s72, %s88
    %p90 = scmp.eq.s32.totalorder %s14, 0
    %p91 = por %p89, %p90
    %s92 = ssub.s32 %s15, %s27
    %p93 = scmp.eq.s32.totalorder %s92, 0
    %s95 = sadd.s32 %s94, 1
    %s96 = scalar_select %p93, %s94, %s95
    %p99 = pneg %p93
    %p100 = scmp.eq.s32.totalorder %s8, 1
    %p101 = por %p99, %p100
    %p102 = scmp.ne.s32.totalorder %s94, %s97
    %p103 = scmp.eq.s32.totalorder %s8, 0
    %p104 = por %p102, %p103
    %p105 = scmp.ne.s32.totalorder %s94, %s97
    %p106 = scmp.eq.s32.totalorder %s13, 1
    %p107 = por %p105, %p106
    %p108 = scmp.ne.s32.totalorder %s97, %s98
    %p109 = scmp.eq.s32.totalorder %s13, 0
    %p110 = por %p108, %p109
    %p111 = scmp.ne.s32.totalorder %s97, %s98
    %p112 = scmp.eq.s32.totalorder %s14, 1
    %p113 = por %p111, %p112
    %p115 = scmp.ne.s32.totalorder %s98, %s114
    %p116 = scmp.eq.s32.totalorder %s14, 0
    %p117 = por %p115, %p116
    %p118 = scmp.le.s32.totalorder 1, %s8
    %p119 = scmp.lt.s32.totalorder %s8, 3
    %p120 = pnand %p118, %p119
    %p121 = pneg %p120
    // Predicated region
    $region9: #{multilabel_cross_entropy_kld.1} parent=5 // pred_check
      _
    $region10: #{multilabel_cross_entropy_kld.1} parent=5 // pred_check_branch
      %123 = sbr.rel (%p120) target = $region12
    $region11: #{multilabel_cross_entropy_kld.1} parent=5 // pred_region
      %s124 = ssub.s32 %s8, 1
    $region12: #{multilabel_cross_entropy_kld.1} parent=5 // pred_fallthru
      _
    %p125 = scmp.lt.s32.totalorder %s8, 2
    // Predicated region
    $region13: #{multilabel_cross_entropy_kld.1} parent=5 // pred_check
      %p126 = pneg %p125
    $region14: #{multilabel_cross_entropy_kld.1} parent=5 // pred_check_branch
      %128 = sbr.rel (%p126) target = $region16
    $region15: #{multilabel_cross_entropy_kld.1} parent=5 // pred_region
      // Predicated region
      $region17: #{multilabel_cross_entropy_kld.1} parent=15 // pred_check
        %p129 = pneg %p46
      $region18: #{multilabel_cross_entropy_kld.1} parent=15 // pred_check_branch
        %131 = sbr.rel (%p129) target = $region20
      $region19: #{multilabel_cross_entropy_kld.1} parent=15 // pred_region
        %s132 = sadd.s32 %s15, %s16
        %p133 = scmp.lt.s32.totalorder %s132, 0
        %s134 = scalar_select %p133, %s132, 0
        %s135 = smul.u32 2, %s134
        %p136 = scmp.lt.s32.totalorder %s135, 1
        %s137 = scalar_select %p136, %s135, 1
        %s138 = smul.addr %s137, 8
        %s139 = scalar_lea.vmem %s0, %s138
        %s140 = sadd.s32 %s15, %s16
        %p141 = scmp.lt.s32.totalorder %s140, 0
        %s142 = scalar_select %p141, %s140, 0
        %s143 = smul.u32 2, %s142
      $region20: #{multilabel_cross_entropy_kld.1} parent=15 // pred_fallthru
        _
      // Predicated region
      $region21: #{multilabel_cross_entropy_kld.1} parent=15 // pred_check
        %p144 = pneg %p78
      $region22: #{multilabel_cross_entropy_kld.1} parent=15 // pred_check_branch
        %146 = sbr.rel (%p144) target = $region24
      $region23: #{multilabel_cross_entropy_kld.1} parent=15 // pred_region
        %s147 = sadd.s32 %s15, %s16
        %p148 = scmp.lt.s32.totalorder %s147, 0
        %s149 = scalar_select %p148, %s147, 0
        %s150 = smul.u32 2, %s149
        %p151 = scmp.lt.s32.totalorder %s150, 1
        %s152 = scalar_select %p151, %s150, 1
        %s153 = smul.addr %s152, 8
        %s154 = scalar_lea.vmem %s1, %s153
        %s155 = sadd.s32 %s15, %s16
        %p156 = scmp.lt.s32.totalorder %s155, 0
        %s157 = scalar_select %p156, %s155, 0
        %s158 = smul.u32 2, %s157
      $region24: #{multilabel_cross_entropy_kld.1} parent=15 // pred_fallthru
        _
    $region16: #{multilabel_cross_entropy_kld.1} parent=5 // pred_fallthru
      _
    %p159 = scmp.le.s32.totalorder 1, %s8
    %p160 = scmp.lt.s32.totalorder %s8, 3
    %p161 = pnand %p159, %p160
    %p162 = pneg %p161
    // Predicated region
    $region25: #{multilabel_cross_entropy_kld.1} parent=5 // pred_check
      _
    $region26: #{multilabel_cross_entropy_kld.1} parent=5 // pred_check_branch
      %164 = sbr.rel (%p161) target = $region28
    $region27: #{multilabel_cross_entropy_kld.1} parent=5 // pred_region
      %s165 = ssub.s32 %s8, 1
      %s166 = sadd.s32 %s17, %s18
      %p167 = scmp.lt.s32.totalorder %s166, 0
      %s168 = scalar_select %p167, %s166, 0
      %s169 = smul.u32 2, %s168
      %p170 = scmp.lt.s32.totalorder %s169, 1
      %s171 = scalar_select %p170, %s169, 1
      %s172 = smul.addr %s171, 8
      %s173 = scalar_lea.vmem %s0, %s172
      %p174 = pneg %p52
      %p175 = pneg %p49
      %s176 = sadd.s32 %s17, %s18
      %p177 = scmp.lt.s32.totalorder %s176, 0
      %s178 = scalar_select %p177, %s176, 0
      %s179 = smul.u32 2, %s178
      %p180 = scmp.lt.s32.totalorder %s179, 1
      %s181 = scalar_select %p180, %s179, 1
      %s182 = smul.addr %s181, 8
      %s183 = scalar_lea.vmem %s1, %s182
      %p184 = pneg %p84
      %p185 = pneg %p81
      %p186 = pneg %p110
      %p187 = pneg %p107
      %p188 = scmp.lt.s32.totalorder %s17, 1
      %s189 = scalar_select %p188, %s17, 1
      %s190 = smul.addr %s189, 8
      %s191 = scalar_lea.vmem %s2, %s190
      %s192 = sadd.s32 %s17, %s18
      %p193 = scmp.lt.s32.totalorder %s192, 0
      %s194 = scalar_select %p193, %s192, 0
      %s195 = smul.u32 2, %s194
      %p196 = scmp.lt.s32.totalorder %s195, 1
      %s197 = scalar_select %p196, %s195, 1
      %s198 = smul.addr %s197, 8
      %s199 = scalar_lea.vmem %s0, %s198
      %s200 = sadd.s32 %s17, %s18
      %p201 = scmp.lt.s32.totalorder %s200, 0
      %s202 = scalar_select %p201, %s200, 0
      %s203 = smul.u32 2, %s202
      %s204 = sadd.s32 %s17, %s18
      %p205 = scmp.lt.s32.totalorder %s204, 0
      %s206 = scalar_select %p205, %s204, 0
      %s207 = smul.u32 2, %s206
      %p208 = scmp.lt.s32.totalorder %s207, 1
      %s209 = scalar_select %p208, %s207, 1
      %s210 = smul.addr %s209, 8
      %s211 = scalar_lea.vmem %s1, %s210
      %s212 = sadd.s32 %s17, %s18
      %p213 = scmp.lt.s32.totalorder %s212, 0
      %s214 = scalar_select %p213, %s212, 0
      %s215 = smul.u32 2, %s214
      %p216 = scmp.lt.s32.totalorder %s17, 1
      %s217 = scalar_select %p216, %s17, 1
      %s218 = smul.addr %s217, 8
      %s219 = scalar_lea.vmem %s2, %s218
      %p220 = scmp.eq.s32.totalorder %s18, 0
      // Predicated region
      $region29: #{multilabel_cross_entropy_kld.1} parent=27 // pred_check
        %p221 = pneg %p220
      $region30: #{multilabel_cross_entropy_kld.1} parent=27 // pred_check_branch
        %223 = sbr.rel (%p221) target = $region32
      $region31: #{multilabel_cross_entropy_kld.1} parent=27 // pred_region
        %224 = vst [vmem:[#allocation2] sm:$0xff] 0.0
      $region32: #{multilabel_cross_entropy_kld.1} parent=27 // pred_fallthru
        _
      %v225 = vld [vmem:[%s199] sm:$0xff]
      %v226 = vld [vmem:[%s199 + $0x8] sm:$0xff]
      %v227 = vld [vmem:[%s211] sm:$0xff]
      %v228 = vld [vmem:[%s211 + $0x8] sm:$0xff]
      %v229 = vmul.f32 %v227, 0.5
      %v230 = vmul.f32 %v228, 0.5
      %v231 = vtanh.pop %v229
      %v232 = vtanh.pop %v230
      %v233 = vmul.f32 %v225, 0.5
      %v234 = vmul.f32 %v226, 0.5
      %v235 = vtanh.pop %v233
      %v236 = vtanh.pop %v234
      %v237 = vsub.f32 %v231, %v235
      %v238 = vsub.f32 %v232, %v236
      %v239 = vsub.f32 %v227, %v225
      %v240 = vsub.f32 %v228, %v226
      %v241 = vmul.f32 %v237, %v239
      %v242 = vmul.f32 %v238, %v240
      %s243 = sadd.s32 %s17, %s18
      %p244 = scmp.lt.s32.totalorder %s243, 0
      // Predicated region
      $region33: #{multilabel_cross_entropy_kld.1} parent=27 // pred_check
        %p245 = pneg %p244
      $region34: #{multilabel_cross_entropy_kld.1} parent=27 // pred_check_branch
        %247 = sbr.rel (%p245) target = $region36
      $region35: #{multilabel_cross_entropy_kld.1} parent=27 // pred_region
        %v248 = vld [vmem:[#allocation2] sm:$0xff]
        %v249 = vadd.f32 %v241, %v242
        %v250 = vadd.f32 %v248, %v249
        %251 = vst [vmem:[#allocation2] sm:$0xff] %v250
      $region36: #{multilabel_cross_entropy_kld.1} parent=27 // pred_fallthru
        _
      %p252 = scmp.ge.s32.totalorder %s243, 0
      // Predicated region
      $region37: #{multilabel_cross_entropy_kld.1} parent=27 // pred_check
        %p253 = pneg %p252
      $region38: #{multilabel_cross_entropy_kld.1} parent=27 // pred_check_branch
        %255 = sbr.rel (%p253) target = $region40
      $region39: #{multilabel_cross_entropy_kld.1} parent=27 // pred_region
        %s256 = smul.u32 %s243, 16
        %v257 = vlaneseq
        %v258 = vshrl.u32 %v257, 7
        %v259 = vadd.s32 %v258, 8
        %v260 = vstv %s256
        %v261 = vadd.s32 %v260, %v258
        %v262 = vadd.s32 %v260, %v259
        %vm263 = vcmp.lt.s32.totalorder %v261, 16
        %vm264 = vcmp.lt.s32.totalorder %v262, 16
        %v265 = vsel %vm263, %v241, 0.0
        %v266 = vsel %vm264, %v242, 0.0
        %v267 = vld [vmem:[#allocation2] sm:$0xff]
        %v268 = vadd.f32 %v265, %v266
        %v269 = vadd.f32 %v267, %v268
        %270 = vst [vmem:[#allocation2] sm:$0xff] %v269
      $region40: #{multilabel_cross_entropy_kld.1} parent=27 // pred_fallthru
        _
      // Predicated region
      $region41: #{multilabel_cross_entropy_kld.1} parent=27 // pred_check
        %p271 = pneg %p220
      $region42: #{multilabel_cross_entropy_kld.1} parent=27 // pred_check_branch
        %273 = sbr.rel (%p271) target = $region44
      $region43: #{multilabel_cross_entropy_kld.1} parent=27 // pred_region
        %v274 = vld [vmem:[#allocation2] sm:$0xff]
        %275 = vst [vmem:[%s219] sm:$0xff] %v274
      $region44: #{multilabel_cross_entropy_kld.1} parent=27 // pred_fallthru
        _
      %p276 = scmp.lt.s32.totalorder %s17, 1
      %s277 = scalar_select %p276, %s17, 1
      %s278 = smul.addr %s277, 8
      %s279 = scalar_lea.vmem %s2, %s278
      // Predicated region
      $region45: #{multilabel_cross_entropy_kld.1} parent=27 // pred_check
        %p280 = pneg %p107
      $region46: #{multilabel_cross_entropy_kld.1} parent=27 // pred_check_branch
        %282 = sbr.rel (%p280) target = $region48
      $region47: #{multilabel_cross_entropy_kld.1} parent=27 // pred_region
        _
      $region48: #{multilabel_cross_entropy_kld.1} parent=27 // pred_fallthru
        _
    $region28: #{multilabel_cross_entropy_kld.1} parent=5 // pred_fallthru
      _
    %p283 = scmp.le.s32.totalorder 2, %s8
    // Predicated region
    $region49: #{multilabel_cross_entropy_kld.1} parent=5 // pred_check
      %p284 = pneg %p283
    $region50: #{multilabel_cross_entropy_kld.1} parent=5 // pred_check_branch
      %286 = sbr.rel (%p284) target = $region52
    $region51: #{multilabel_cross_entropy_kld.1} parent=5 // pred_region
      %s287 = ssub.s32 %s8, 2
      // Predicated region
      $region53: #{multilabel_cross_entropy_kld.1} parent=51 // pred_check
        %p288 = pneg %p113
      $region54: #{multilabel_cross_entropy_kld.1} parent=51 // pred_check_branch
        %290 = sbr.rel (%p288) target = $region56
      $region55: #{multilabel_cross_entropy_kld.1} parent=51 // pred_region
        %p291 = scmp.lt.s32.totalorder %s19, 1
        %s292 = scalar_select %p291, %s19, 1
        %s293 = smul.addr %s292, 8
        %s294 = scalar_lea.vmem %s2, %s293
      $region56: #{multilabel_cross_entropy_kld.1} parent=51 // pred_fallthru
        _
    $region52: #{multilabel_cross_entropy_kld.1} parent=5 // pred_fallthru
      _
  $region6: #{multilabel_cross_entropy_kld.1} parent=0 // loop_footer
    %s12 = sadd.s32 1, %s8
  $region7: #{multilabel_cross_entropy_kld.1} parent=0 // loop_footer_branch
    %7 = sbr.rel target = $region3
  $region8: #{multilabel_cross_entropy_kld.1} parent=0 // loop_exit
    _

</llo_original>
